<compile_context>
chip_gen: v6e
topology: v6e:2x2x1
jax: 0.10.0
libtpu: 0.0.40
codegen_flags: <defaults>
</compile_context>

<pallas_src>
import jax
import jax.numpy as jnp
from jax.experimental import pallas as pl
from jax.experimental.pallas import tpu as pltpu


def _round_up(x, m):
    return ((x + m - 1) // m) * m


def _head_kernel(h_ref, m_ref, w1_ref, b1_ref, w2_ref, b2_ref, out_ref, sum_ref, cnt_ref):
    """Fused masked mean-pool -> dense -> ReLU -> (dropout=identity) -> classifier.

    Grid is (batch, seq_tiles); seq is the reduction axis. Pooled sum / count are
    accumulated in f32 VMEM scratch; the two small matmuls + store run on the last seq tile.
    """
    s = pl.program_id(1)

    @pl.when(s == 0)
    def _():
        sum_ref[...] = jnp.zeros_like(sum_ref)
        cnt_ref[...] = jnp.zeros_like(cnt_ref)

    h = h_ref[0]                                   # (TS, H)  bf16 activation tile
    m = m_ref[0]                                   # (1, TS)  f32 mask row

    # Masked sum over the seq tile as an MXU contraction: (1, TS) @ (TS, H) -> (1, H), f32 acc.
    sum_ref[...] += jnp.dot(m.astype(h.dtype), h, preferred_element_type=jnp.float32)
    # Token count (f32 accumulate).
    cnt_ref[...] += jnp.sum(m, axis=1, keepdims=True)

    @pl.when(s == pl.num_programs(1) - 1)
    def _():
        counts = jnp.maximum(cnt_ref[...], 1e-9)                     # torch.clamp(min=1e-9)
        pooled = sum_ref[...] / counts                               # (1, H) f32

        hidden = jnp.dot(pooled.astype(w1_ref.dtype), w1_ref[...],
                         preferred_element_type=jnp.float32) + b1_ref[...]   # (1, HD) f32
        act = jnp.maximum(hidden, 0.0)                               # ReLU; Dropout = identity
        logits = jnp.dot(act.astype(w2_ref.dtype), w2_ref[...],
                         preferred_element_type=jnp.float32) + b2_ref[...]   # (1, NC_PAD) f32
        out_ref[0] = logits.astype(out_ref.dtype)


def pooled_classifier_head(last_hidden_state, attention_mask, w_dense, b_dense, w_cls, b_cls):
    """Pallas call wrapping the pooled-classifier head of ProblemClassifier."""
    B, S, H = last_hidden_state.shape
    HD = w_dense.shape[1]
    NC = w_cls.shape[1]
    NC_PAD = _round_up(NC, 128)                    # lane-dense output store

    # Seq tiling: one (sublane-aligned) tile for short sequences, else 256-wide chunks
    # (multiple of 128 lanes for the mask block, small enough for v7x's 64 MiB VMEM).
    if S <= 256:
        TS = _round_up(S, 8)
    else:
        TS = 256
    S_PAD = _round_up(S, TS)

    # bf16 activations (halves HBM traffic on the dominant B*S*H read); f32 mask.
    h = last_hidden_state.astype(jnp.bfloat16)
    m = attention_mask.astype(jnp.float32)
    if S_PAD != S:
        h = jnp.pad(h, ((0, 0), (0, S_PAD - S), (0, 0)))
        m = jnp.pad(m, ((0, 0), (0, S_PAD - S)))   # padded tokens are masked out
    m3 = m.reshape(B, 1, S_PAD)

    # bf16 matmul operands, f32 biases (added after f32 accumulation).
    w1 = w_dense.astype(jnp.bfloat16)
    b1 = b_dense.reshape(1, HD).astype(jnp.float32)
    w2 = jnp.pad(w_cls.astype(jnp.bfloat16), ((0, 0), (0, NC_PAD - NC)))
    b2 = jnp.pad(b_cls.reshape(1, NC).astype(jnp.float32), ((0, 0), (0, NC_PAD - NC)))

    grid = (B, S_PAD // TS)

    out = pl.pallas_call(
        _head_kernel,
        out_shape=jax.ShapeDtypeStruct((B, 1, NC_PAD), jnp.float32),
        grid_spec=pltpu.PrefetchScalarGridSpec(
            num_scalar_prefetch=0,
            grid=grid,
            in_specs=[
                pl.BlockSpec((1, TS, H), lambda b, s: (b, s, 0)),     # activations (pipelined)
                pl.BlockSpec((1, 1, TS), lambda b, s: (b, 0, s)),     # mask row
                pl.BlockSpec((H, HD), lambda b, s: (0, 0)),           # dense W   (resident)
                pl.BlockSpec((1, HD), lambda b, s: (0, 0)),           # dense b   (resident)
                pl.BlockSpec((HD, NC_PAD), lambda b, s: (0, 0)),      # cls W     (resident)
                pl.BlockSpec((1, NC_PAD), lambda b, s: (0, 0)),       # cls b     (resident)
            ],
            out_specs=pl.BlockSpec((1, 1, NC_PAD), lambda b, s: (b, 0, 0)),
            scratch_shapes=[
                pltpu.VMEM((1, H), jnp.float32),   # pooled-sum accumulator
                pltpu.VMEM((1, 1), jnp.float32),   # token-count accumulator
            ],
        ),
        compiler_params=pltpu.CompilerParams(
            dimension_semantics=("parallel", "arbitrary"),
            vmem_limit_bytes=32 * 1024 * 1024,
        ),
    )(h, m3, w1, b1, w2, b2)

    return out[:, 0, :NC]


def run_problem_classifier(input_ids, attention_mask, params):
    # TODO(synk): full HF transformer encoder not translated; deterministic bf16 embedding
    # lookup used as a stand-in for embedding_model(...).last_hidden_state.
    last_hidden_state = params["emb_table"][input_ids]               # (B, S, H) bf16
    return pooled_classifier_head(
        last_hidden_state, attention_mask,
        params["w_dense"], params["b_dense"],
        params["w_cls"], params["b_cls"],
    )


def init_params(key, vocab_size, hidden_size, hidden_dim, num_class):
    k_emb, k_w1, k_b1, k_w2, k_b2 = jax.random.split(key, 5)
    # PyTorch Linear default init: U(-1/sqrt(fan_in), 1/sqrt(fan_in)); deterministic via PRNGKey.
    lim1 = 1.0 / jnp.sqrt(hidden_size)
    lim2 = 1.0 / jnp.sqrt(hidden_dim)
    return {
        "emb_table": (jax.random.normal(k_emb, (vocab_size, hidden_size), jnp.float32)
                      * 0.02).astype(jnp.bfloat16),
        "w_dense": jax.random.uniform(k_w1, (hidden_size, hidden_dim), jnp.float32, -lim1, lim1),
        "b_dense": jax.random.uniform(k_b1, (hidden_dim,), jnp.float32, -lim1, lim1),
        "w_cls": jax.random.uniform(k_w2, (hidden_dim, num_class), jnp.float32, -lim2, lim2),
        "b_cls": jax.random.uniform(k_b2, (num_class,), jnp.float32, -lim2, lim2),
    }


if __name__ == "__main__":
    B, S = 2, 8                 # batch, seq
    VOCAB = 64
    HIDDEN_SIZE = 32            # embedding_model.config.hidden_size
    HIDDEN_DIM = 128            # classifier hidden_dim (module default)
    NUM_CLASS = 7               # module default

    key = jax.random.PRNGKey(0)
    k_ids, k_params = jax.random.split(key)

    input_ids = jax.random.randint(k_ids, (B, S), 0, VOCAB, dtype=jnp.int32)
    # first sequence fully attended, second sequence padded after 5 tokens
    attention_mask = jnp.array(
        [[1, 1, 1, 1, 1, 1, 1, 1],
         [1, 1, 1, 1, 1, 0, 0, 0]], dtype=jnp.int32)

    params = init_params(k_params, VOCAB, HIDDEN_SIZE, HIDDEN_DIM, NUM_CLASS)

    logits = run_problem_classifier(input_ids, attention_mask, params)
    logits = jax.block_until_ready(logits)

    # Reference in plain JAX, matching the kernel's dtype policy (bf16 operands, f32 accumulate).
    lhs = params["emb_table"][input_ids].astype(jnp.float32)
    m = attention_mask.astype(jnp.float32)[:, :, None]
    pooled = jnp.sum(lhs * m, axis=1) / jnp.maximum(jnp.sum(m, axis=1), 1e-9)
    hidden = jnp.dot(pooled.astype(jnp.bfloat16), params["w_dense"].astype(jnp.bfloat16),
                     preferred_element_type=jnp.float32) + params["b_dense"]
    act = jnp.maximum(hidden, 0.0)
    ref = jnp.dot(act.astype(jnp.bfloat16), params["w_cls"].astype(jnp.bfloat16),
                  preferred_element_type=jnp.float32) + params["b_cls"]

    assert logits.shape == (B, NUM_CLASS)
    assert jnp.allclose(logits, ref, atol=1e-3, rtol=1e-3)

    print("KERNEL_OK")
</pallas_src>

<mosaic_0001>
module attributes {stable_mosaic.version = 11 : i64} {
  func.func @_head_kernel(%arg0: i32, %arg1: i32, %arg2: memref<1x8x32xbf16, #tpu.memory_space<vmem>>, %arg3: memref<1x1x8xf32, #tpu.memory_space<vmem>>, %arg4: memref<32x128xbf16, #tpu.memory_space<vmem>>, %arg5: memref<1x128xf32, #tpu.memory_space<vmem>>, %arg6: memref<128x128xbf16, #tpu.memory_space<vmem>>, %arg7: memref<1x128xf32, #tpu.memory_space<vmem>>, %arg8: memref<1x1x128xf32, #tpu.memory_space<vmem>>, %arg9: memref<1x32xf32, #tpu.memory_space<vmem>>, %arg10: memref<1x1xf32, #tpu.memory_space<vmem>>) attributes {dimension_semantics = [#tpu.dimension_semantics<parallel>, #tpu.dimension_semantics<arbitrary>], iteration_bounds = array<i64: 2, 1>, scalar_prefetch = 0 : i64, scratch_operands = 2 : i64, tpu.core_type = #tpu.core_type<tc>, window_params = [{transform_indices = @transform_0, window_bounds = array<i64: 1, 8, 32>}, {transform_indices = @transform_1, window_bounds = array<i64: 1, 1, 8>}, {pipeline_mode = #tpu.pipeline_mode<synchronous>, transform_indices = @transform_2, window_bounds = array<i64: 32, 128>}, {pipeline_mode = #tpu.pipeline_mode<synchronous>, transform_indices = @transform_3, window_bounds = array<i64: 1, 128>}, {pipeline_mode = #tpu.pipeline_mode<synchronous>, transform_indices = @transform_4, window_bounds = array<i64: 128, 128>}, {pipeline_mode = #tpu.pipeline_mode<synchronous>, transform_indices = @transform_5, window_bounds = array<i64: 1, 128>}, {transform_indices = @transform_6, window_bounds = array<i64: 1, 1, 128>}]} {
    %c0_i32 = arith.constant 0 : i32
    %0 = arith.cmpi eq, %arg1, %c0_i32 : i32
    %1 = arith.extui %0 : i1 to i32
    %c0_i32_0 = arith.constant 0 : i32
    %2 = arith.cmpi ne, %1, %c0_i32_0 : i32
    scf.if %2 {
      %cst_17 = arith.constant 0.000000e+00 : f32
      %20 = vector.broadcast %cst_17 : f32 to vector<1x32xf32>
      %c0_18 = arith.constant 0 : index
      %c0_19 = arith.constant 0 : index
      %21 = vector.load %arg9[%c0_18, %c0_19] : memref<1x32xf32, #tpu.memory_space<vmem>>, vector<1x32xf32>
      tpu.vector_store %arg9[%c0_18, %c0_19], %20 {strides = array<i32>} : memref<1x32xf32, #tpu.memory_space<vmem>>, vector<1x32xf32>,
      %cst_20 = arith.constant 0.000000e+00 : f32
      %22 = vector.broadcast %cst_20 : f32 to vector<1x1xf32>
      %c0_21 = arith.constant 0 : index
      %c0_22 = arith.constant 0 : index
      %23 = vector.load %arg10[%c0_21, %c0_22] : memref<1x1xf32, #tpu.memory_space<vmem>>, vector<1x1xf32>
      tpu.vector_store %arg10[%c0_21, %c0_22], %22 {strides = array<i32>} : memref<1x1xf32, #tpu.memory_space<vmem>>, vector<1x1xf32>,
    } else {
    }
    %c0 = arith.constant 0 : index
    %c0_1 = arith.constant 0 : index
    %c0_2 = arith.constant 0 : index
    %3 = vector.load %arg2[%c0, %c0_1, %c0_2] : memref<1x8x32xbf16, #tpu.memory_space<vmem>>, vector<1x8x32xbf16>
    %4 = vector.shape_cast %3 : vector<1x8x32xbf16> to vector<8x32xbf16>
    %c0_3 = arith.constant 0 : index
    %c0_4 = arith.constant 0 : index
    %c0_5 = arith.constant 0 : index
    %5 = vector.load %arg3[%c0_3, %c0_4, %c0_5] : memref<1x1x8xf32, #tpu.memory_space<vmem>>, vector<1x1x8xf32>
    %6 = vector.shape_cast %5 : vector<1x1x8xf32> to vector<1x8xf32>
    %c0_6 = arith.constant 0 : index
    %c0_7 = arith.constant 0 : index
    %7 = vector.load %arg9[%c0_6, %c0_7] : memref<1x32xf32, #tpu.memory_space<vmem>>, vector<1x32xf32>
    %8 = arith.truncf %6 : vector<1x8xf32> to vector<1x8xbf16>
    %cst = arith.constant dense<0.000000e+00> : vector<1x32xf32>
    %9 = tpu.matmul %8, %4, %cst {dimension_numbers = #tpu.dot_dimension_numbers<[1], [0], [0], [1], [0, 0, 1, 1], [], []>} : vector<1x8xbf16>, vector<8x32xbf16>, vector<1x32xf32> -> vector<1x32xf32>
    %10 = arith.addf %7, %9 : vector<1x32xf32>
    %c0_8 = arith.constant 0 : index
    %c0_9 = arith.constant 0 : index
    %11 = vector.load %arg9[%c0_8, %c0_9] : memref<1x32xf32, #tpu.memory_space<vmem>>, vector<1x32xf32>
    tpu.vector_store %arg9[%c0_8, %c0_9], %10 {strides = array<i32>} : memref<1x32xf32, #tpu.memory_space<vmem>>, vector<1x32xf32>,
    %c0_10 = arith.constant 0 : index
    %c0_11 = arith.constant 0 : index
    %12 = vector.load %arg10[%c0_10, %c0_11] : memref<1x1xf32, #tpu.memory_space<vmem>>, vector<1x1xf32>
    %cst_12 = arith.constant dense<0.000000e+00> : vector<1xf32>
    %13 = vector.multi_reduction <add>, %6, %cst_12 [1] : vector<1x8xf32> to vector<1xf32>
    %14 = vector.shape_cast %13 : vector<1xf32> to vector<1x1xf32>
    %15 = arith.addf %12, %14 : vector<1x1xf32>
    %c0_13 = arith.constant 0 : index
    %c0_14 = arith.constant 0 : index
    %16 = vector.load %arg10[%c0_13, %c0_14] : memref<1x1xf32, #tpu.memory_space<vmem>>, vector<1x1xf32>
    tpu.vector_store %arg10[%c0_13, %c0_14], %15 {strides = array<i32>} : memref<1x1xf32, #tpu.memory_space<vmem>>, vector<1x1xf32>,
    %c0_i32_15 = arith.constant 0 : i32
    %17 = arith.cmpi eq, %arg1, %c0_i32_15 : i32
    %18 = arith.extui %17 : i1 to i32
    %c0_i32_16 = arith.constant 0 : i32
    %19 = arith.cmpi ne, %18, %c0_i32_16 : i32
    scf.if %19 {
      %c0_17 = arith.constant 0 : index
      %c0_18 = arith.constant 0 : index
      %20 = vector.load %arg10[%c0_17, %c0_18] : memref<1x1xf32, #tpu.memory_space<vmem>>, vector<1x1xf32>
      %cst_19 = arith.constant 9.99999971E-10 : f32
      %21 = vector.broadcast %cst_19 : f32 to vector<1x1xf32>
      %22 = arith.maximumf %20, %21 : vector<1x1xf32>
      %c0_20 = arith.constant 0 : index
      %c0_21 = arith.constant 0 : index
      %23 = vector.load %arg9[%c0_20, %c0_21] : memref<1x32xf32, #tpu.memory_space<vmem>>, vector<1x32xf32>
      %24 = vector.broadcast %22 : vector<1x1xf32> to vector<1x32xf32>
      %25 = arith.divf %23, %24 : vector<1x32xf32>
      %26 = arith.truncf %25 : vector<1x32xf32> to vector<1x32xbf16>
      %c0_22 = arith.constant 0 : index
      %c0_23 = arith.constant 0 : index
      %27 = vector.load %arg4[%c0_22, %c0_23] : memref<32x128xbf16, #tpu.memory_space<vmem>>, vector<32x128xbf16>
      %cst_24 = arith.constant dense<0.000000e+00> : vector<1x128xf32>
      %28 = tpu.matmul %26, %27, %cst_24 {dimension_numbers = #tpu.dot_dimension_numbers<[1], [0], [0], [1], [0, 0, 1, 1], [], []>} : vector<1x32xbf16>, vector<32x128xbf16>, vector<1x128xf32> -> vector<1x128xf32>
      %c0_25 = arith.constant 0 : index
      %c0_26 = arith.constant 0 : index
      %29 = vector.load %arg5[%c0_25, %c0_26] : memref<1x128xf32, #tpu.memory_space<vmem>>, vector<1x128xf32>
      %30 = arith.addf %28, %29 : vector<1x128xf32>
      %cst_27 = arith.constant 0.000000e+00 : f32
      %31 = vector.broadcast %cst_27 : f32 to vector<1x128xf32>
      %32 = arith.maximumf %30, %31 : vector<1x128xf32>
      %33 = arith.truncf %32 : vector<1x128xf32> to vector<1x128xbf16>
      %c0_28 = arith.constant 0 : index
      %c0_29 = arith.constant 0 : index
      %34 = vector.load %arg6[%c0_28, %c0_29] : memref<128x128xbf16, #tpu.memory_space<vmem>>, vector<128x128xbf16>
      %cst_30 = arith.constant dense<0.000000e+00> : vector<1x128xf32>
      %35 = tpu.matmul %33, %34, %cst_30 {dimension_numbers = #tpu.dot_dimension_numbers<[1], [0], [0], [1], [0, 0, 1, 1], [], []>} : vector<1x128xbf16>, vector<128x128xbf16>, vector<1x128xf32> -> vector<1x128xf32>
      %c0_31 = arith.constant 0 : index
      %c0_32 = arith.constant 0 : index
      %36 = vector.load %arg7[%c0_31, %c0_32] : memref<1x128xf32, #tpu.memory_space<vmem>>, vector<1x128xf32>
      %37 = arith.addf %35, %36 : vector<1x128xf32>
      %c0_33 = arith.constant 0 : index
      %c0_34 = arith.constant 0 : index
      %c0_35 = arith.constant 0 : index
      %38 = vector.load %arg8[%c0_33, %c0_34, %c0_35] : memref<1x1x128xf32, #tpu.memory_space<vmem>>, vector<1x1x128xf32>
      %39 = vector.shape_cast %38 : vector<1x1x128xf32> to vector<1x128xf32>
      %40 = vector.shape_cast %37 : vector<1x128xf32> to vector<1x1x128xf32>
      tpu.vector_store %arg8[%c0_33, %c0_34, %c0_35], %40 {strides = array<i32>} : memref<1x1x128xf32, #tpu.memory_space<vmem>>, vector<1x1x128xf32>,
    } else {
    }
    return
  }
  func.func @transform_0(%arg0: i32, %arg1: i32) -> (i32, i32, i32) {
    %c0_i32 = arith.constant 0 : i32
    %c0_i32_0 = arith.constant 0 : i32
    return %arg0, %arg1, %c0_i32 : i32, i32, i32
  }
  func.func @transform_1(%arg0: i32, %arg1: i32) -> (i32, i32, i32) {
    %c0_i32 = arith.constant 0 : i32
    %c0_i32_0 = arith.constant 0 : i32
    return %arg0, %c0_i32, %arg1 : i32, i32, i32
  }
  func.func @transform_2(%arg0: i32, %arg1: i32) -> (i32, i32) {
    %c0_i32 = arith.constant 0 : i32
    %c0_i32_0 = arith.constant 0 : i32
    %c0_i32_1 = arith.constant 0 : i32
    return %c0_i32, %c0_i32_0 : i32, i32
  }
  func.func @transform_3(%arg0: i32, %arg1: i32) -> (i32, i32) {
    %c0_i32 = arith.constant 0 : i32
    %c0_i32_0 = arith.constant 0 : i32
    %c0_i32_1 = arith.constant 0 : i32
    return %c0_i32, %c0_i32_0 : i32, i32
  }
  func.func @transform_4(%arg0: i32, %arg1: i32) -> (i32, i32) {
    %c0_i32 = arith.constant 0 : i32
    %c0_i32_0 = arith.constant 0 : i32
    %c0_i32_1 = arith.constant 0 : i32
    return %c0_i32, %c0_i32_0 : i32, i32
  }
  func.func @transform_5(%arg0: i32, %arg1: i32) -> (i32, i32) {
    %c0_i32 = arith.constant 0 : i32
    %c0_i32_0 = arith.constant 0 : i32
    %c0_i32_1 = arith.constant 0 : i32
    return %c0_i32, %c0_i32_0 : i32, i32
  }
  func.func @transform_6(%arg0: i32, %arg1: i32) -> (i32, i32, i32) {
    %c0_i32 = arith.constant 0 : i32
    %c0_i32_0 = arith.constant 0 : i32
    %c0_i32_1 = arith.constant 0 : i32
    return %arg0, %c0_i32, %c0_i32_0 : i32, i32, i32
  }
}

</mosaic_0001>

<llo_original>
// kernel: tpu_custom_call.1
$region0: #{tpu_custom_call.1}
  #allocation0 [shape = 'u32[]', space=smem, size = 0x4, offset = 0x4, fixed_abs, tag = 'smem constant byte address 0x4 - core index']
  #allocation1 [shape = 'u32[144,128]{1,0:T(1,128)}', space=vmem, size = 0x12000, scoped, tag = 'internal scratch']
  #allocation2 [shape = 'f32[1,32]{1,0:T(1,128)}', space=vmem, size = 0x200, scoped, tag = 'scratch operand']
  #allocation3 [shape = 'f32[1,1]{1,0:T(1,128)}', space=vmem, size = 0x200, scoped, tag = 'scratch operand']
  %s0 = inlined_call_operand.hbm [shape: bf16[2,8,32], index: 0, kind: input, shape index: {}]
  %s1 = inlined_call_operand.hbm [shape: f32[2,1,8], index: 1, kind: input, shape index: {}]
  %s2 = inlined_call_operand.hbm [shape: bf16[32,128], index: 2, kind: input, shape index: {}]
  %s3 = inlined_call_operand.vmem [shape: f32[1,128], index: 3, kind: input, shape index: {}]
  %s4 = inlined_call_operand.hbm [shape: bf16[128,128], index: 4, kind: input, shape index: {}]
  %s5 = inlined_call_operand.vmem [shape: f32[1,128], index: 5, kind: input, shape index: {}]
  %s6 = inlined_call_operand.hbm [shape: f32[2,1,128], index: 6, kind: output, shape index: {}]
  %s7 = sld [smem:[#allocation0]]
  $region81: #{tpu_custom_call.1} parent=0
    _
  %s9 = ssub.s32 1, %s7
  %s10 = scalar_select 0, %s9, %s7
  $region1: #{tpu_custom_call.1} parent=0
    #allocation4 [shape = 'u8[4096]{0}', space=vmem, size = 0x1000, scoped, tag = 'input window, operand 0']
    #allocation5 [shape = 's32[2]{0}', space=sflag, size = 0x8, scoped, tag = 'scoped memory for tpu_custom_call.1']
    #allocation6 [shape = 's32[2]{0}', space=sflag, size = 0x8, scoped, tag = 'scoped memory for tpu_custom_call.1']
    #allocation7 [shape = 'u8[1024]{0}', space=vmem, size = 0x400, scoped, tag = 'input window, operand 1']
    #allocation8 [shape = 's32[2]{0}', space=sflag, size = 0x8, scoped, tag = 'scoped memory for tpu_custom_call.1']
    #allocation9 [shape = 'u8[8192]{0}', space=vmem, size = 0x2000, scoped, tag = 'input window, operand 2, single buffered']
    #allocation10 [shape = 'u8[32768]{0}', space=vmem, size = 0x8000, scoped, tag = 'input window, operand 4, single buffered']
    #allocation11 [shape = 's32[1]{0}', space=sflag, size = 0x4, scoped, tag = 'scoped memory for tpu_custom_call.1']
    #allocation12 [shape = 'u8[1024]{0}', space=vmem, size = 0x400, scoped, tag = 'output window, operand 0']
    %11 = vsyncpa [#allocation5], 0
    %s12 = scalar_lea.sflag [#allocation5], 1
    %13 = vsyncpa %s12, 0
    %14 = vsyncpa [#allocation8], 0
    %s15 = scalar_lea.sflag [#allocation8], 1
    %16 = vsyncpa %s15, 0
    %17 = vsyncpa [#allocation11], 0
    %18 = vsyncpa [#allocation6], 0
    %s19 = scalar_lea.sflag [#allocation6], 1
    %20 = vsyncpa %s19, 0
    loop: start=0, step=1, limit=4
    $region2: #{tpu_custom_call.1} parent=1 // loop_pre_header
      _
    $region3: #{tpu_custom_call.1} parent=1 // loop_header
      %s22 = sphi 0, %s26
      %p23 = scmp.ge.s32.totalorder %s22, 4
      %s29 = sphi 0, %s41
      %s30 = sphi 0, %s37
      %s31 = sphi 0, %s29
      %s32 = sphi 0, %s30
      %s33 = sphi 0, %s31
      %s34 = sphi 0, %s32
      %s46 = sphi 0, %s48
      %s49 = sphi 0, %s46
      %s50 = sphi 0, %s49
      %s66 = sphi 0, %s50
      %s74 = sphi 0, %s76
      %s77 = sphi 0, %s74
      %s78 = sphi 0, %s77
      %s94 = sphi 0, %s78
      %s98 = sphi 0, %s98
      %s100 = sphi 0, %s98
      %s101 = sphi 0, %s100
      %s115 = sphi 0, %s101
      %s119 = sphi 0, %s119
      %s121 = sphi 0, %s119
      %s122 = sphi 0, %s121
      %s136 = sphi 0, %s122
      %s140 = sphi 0, %s140
      %s142 = sphi 0, %s140
      %s143 = sphi 0, %s142
      %s157 = sphi 0, %s143
      %s161 = sphi 0, %s161
      %s163 = sphi 0, %s161
      %s164 = sphi 0, %s163
      %s178 = sphi 0, %s164
      %s184 = sphi 0, %s186
      %s187 = sphi 0, %s184
      %s188 = sphi 0, %s187
      %s204 = sphi 0, %s188
    $region4: #{tpu_custom_call.1} parent=1 // loop_header_branch
      %25 = sbr.rel (%p23) target = $region8
    $region5: #{tpu_custom_call.1} parent=1 // loop_body
      %s27 = ssub.s32 %s22, 1
      %s28 = ssub.s32 %s22, 2
      %s35 = sadd.s32 1, %s30
      %p36 = scmp.ge.s32.totalorder %s35, 1
      %s37 = scalar_select %p36, 0, %s35
      %s38 = sadd.s32 1, %s29
      %s39 = scalar_select %p36, %s38, %s29
      %p40 = scmp.ge.s32.totalorder %s39, 2
      %s41 = scalar_select %p40, 0, %s39
      %s42 = ssub.s32 %s29, %s41
      %s43 = ssub.s32 %s30, %s37
      %s44 = sor.u32 %s42, %s43
      %p45 = scmp.eq.s32.totalorder %s44, 0
      %s47 = sadd.s32 %s46, 1
      %s48 = scalar_select %p45, %s46, %s47
      %p51 = pneg %p45
      %p52 = scmp.eq.s32.totalorder %s22, 1
      %p53 = por %p51, %p52
      %p54 = scmp.ne.s32.totalorder %s46, %s49
      %p55 = scmp.eq.s32.totalorder %s22, 0
      %p56 = por %p54, %p55
      %p57 = scmp.ne.s32.totalorder %s46, %s49
      %p58 = scmp.eq.s32.totalorder %s27, 1
      %p59 = por %p57, %p58
      %p60 = scmp.ne.s32.totalorder %s49, %s50
      %p61 = scmp.eq.s32.totalorder %s27, 0
      %p62 = por %p60, %p61
      %p63 = scmp.ne.s32.totalorder %s49, %s50
      %p64 = scmp.eq.s32.totalorder %s28, 1
      %p65 = por %p63, %p64
      %p67 = scmp.ne.s32.totalorder %s50, %s66
      %p68 = scmp.eq.s32.totalorder %s28, 0
      %p69 = por %p67, %p68
      %s70 = ssub.s32 %s29, %s41
      %s71 = ssub.s32 %s30, %s37
      %s72 = sor.u32 %s70, %s71
      %p73 = scmp.eq.s32.totalorder %s72, 0
      %s75 = sadd.s32 %s74, 1
      %s76 = scalar_select %p73, %s74, %s75
      %p79 = pneg %p73
      %p80 = scmp.eq.s32.totalorder %s22, 1
      %p81 = por %p79, %p80
      %p82 = scmp.ne.s32.totalorder %s74, %s77
      %p83 = scmp.eq.s32.totalorder %s22, 0
      %p84 = por %p82, %p83
      %p85 = scmp.ne.s32.totalorder %s74, %s77
      %p86 = scmp.eq.s32.totalorder %s27, 1
      %p87 = por %p85, %p86
      %p88 = scmp.ne.s32.totalorder %s77, %s78
      %p89 = scmp.eq.s32.totalorder %s27, 0
      %p90 = por %p88, %p89
      %p91 = scmp.ne.s32.totalorder %s77, %s78
      %p92 = scmp.eq.s32.totalorder %s28, 1
      %p93 = por %p91, %p92
      %p95 = scmp.ne.s32.totalorder %s78, %s94
      %p96 = scmp.eq.s32.totalorder %s28, 0
      %p97 = por %p95, %p96
      %s99 = sadd.s32 %s98, 1
      %p102 = scmp.eq.s32.totalorder %s22, 1
      %p103 = scmp.ne.s32.totalorder %s98, %s100
      %p104 = scmp.eq.s32.totalorder %s22, 0
      %p105 = por %p103, %p104
      %p106 = scmp.ne.s32.totalorder %s98, %s100
      %p107 = scmp.eq.s32.totalorder %s27, 1
      %p108 = por %p106, %p107
      %p109 = scmp.ne.s32.totalorder %s100, %s101
      %p110 = scmp.eq.s32.totalorder %s27, 0
      %p111 = por %p109, %p110
      %p112 = scmp.ne.s32.totalorder %s100, %s101
      %p113 = scmp.eq.s32.totalorder %s28, 1
      %p114 = por %p112, %p113
      %p116 = scmp.ne.s32.totalorder %s101, %s115
      %p117 = scmp.eq.s32.totalorder %s28, 0
      %p118 = por %p116, %p117
      %s120 = sadd.s32 %s119, 1
      %p123 = scmp.eq.s32.totalorder %s22, 1
      %p124 = scmp.ne.s32.totalorder %s119, %s121
      %p125 = scmp.eq.s32.totalorder %s22, 0
      %p126 = por %p124, %p125
      %p127 = scmp.ne.s32.totalorder %s119, %s121
      %p128 = scmp.eq.s32.totalorder %s27, 1
      %p129 = por %p127, %p128
      %p130 = scmp.ne.s32.totalorder %s121, %s122
      %p131 = scmp.eq.s32.totalorder %s27, 0
      %p132 = por %p130, %p131
      %p133 = scmp.ne.s32.totalorder %s121, %s122
      %p134 = scmp.eq.s32.totalorder %s28, 1
      %p135 = por %p133, %p134
      %p137 = scmp.ne.s32.totalorder %s122, %s136
      %p138 = scmp.eq.s32.totalorder %s28, 0
      %p139 = por %p137, %p138
      %s141 = sadd.s32 %s140, 1
      %p144 = scmp.eq.s32.totalorder %s22, 1
      %p145 = scmp.ne.s32.totalorder %s140, %s142
      %p146 = scmp.eq.s32.totalorder %s22, 0
      %p147 = por %p145, %p146
      %p148 = scmp.ne.s32.totalorder %s140, %s142
      %p149 = scmp.eq.s32.totalorder %s27, 1
      %p150 = por %p148, %p149
      %p151 = scmp.ne.s32.totalorder %s142, %s143
      %p152 = scmp.eq.s32.totalorder %s27, 0
      %p153 = por %p151, %p152
      %p154 = scmp.ne.s32.totalorder %s142, %s143
      %p155 = scmp.eq.s32.totalorder %s28, 1
      %p156 = por %p154, %p155
      %p158 = scmp.ne.s32.totalorder %s143, %s157
      %p159 = scmp.eq.s32.totalorder %s28, 0
      %p160 = por %p158, %p159
      %s162 = sadd.s32 %s161, 1
      %p165 = scmp.eq.s32.totalorder %s22, 1
      %p166 = scmp.ne.s32.totalorder %s161, %s163
      %p167 = scmp.eq.s32.totalorder %s22, 0
      %p168 = por %p166, %p167
      %p169 = scmp.ne.s32.totalorder %s161, %s163
      %p170 = scmp.eq.s32.totalorder %s27, 1
      %p171 = por %p169, %p170
      %p172 = scmp.ne.s32.totalorder %s163, %s164
      %p173 = scmp.eq.s32.totalorder %s27, 0
      %p174 = por %p172, %p173
      %p175 = scmp.ne.s32.totalorder %s163, %s164
      %p176 = scmp.eq.s32.totalorder %s28, 1
      %p177 = por %p175, %p176
      %p179 = scmp.ne.s32.totalorder %s164, %s178
      %p180 = scmp.eq.s32.totalorder %s28, 0
      %p181 = por %p179, %p180
      %s182 = ssub.s32 %s29, %s41
      %p183 = scmp.eq.s32.totalorder %s182, 0
      %s185 = sadd.s32 %s184, 1
      %s186 = scalar_select %p183, %s184, %s185
      %p189 = pneg %p183
      %p190 = scmp.eq.s32.totalorder %s22, 1
      %p191 = por %p189, %p190
      %p192 = scmp.ne.s32.totalorder %s184, %s187
      %p193 = scmp.eq.s32.totalorder %s22, 0
      %p194 = por %p192, %p193
      %p195 = scmp.ne.s32.totalorder %s184, %s187
      %p196 = scmp.eq.s32.totalorder %s27, 1
      %p197 = por %p195, %p196
      %p198 = scmp.ne.s32.totalorder %s187, %s188
      %p199 = scmp.eq.s32.totalorder %s27, 0
      %p200 = por %p198, %p199
      %p201 = scmp.ne.s32.totalorder %s187, %s188
      %p202 = scmp.eq.s32.totalorder %s28, 1
      %p203 = por %p201, %p202
      %p205 = scmp.ne.s32.totalorder %s188, %s204
      %p206 = scmp.eq.s32.totalorder %s28, 0
      %p207 = por %p205, %p206
      %p208 = scmp.le.s32.totalorder 1, %s22
      %p209 = scmp.lt.s32.totalorder %s22, 3
      %p210 = pnand %p208, %p209
      %p211 = pneg %p210
      // Predicated region
      $region9: #{tpu_custom_call.1} parent=5 // pred_check
        _
      $region10: #{tpu_custom_call.1} parent=5 // pred_check_branch
        %213 = sbr.rel (%p210) target = $region12
      $region11: #{tpu_custom_call.1} parent=5 // pred_region
        %s214 = ssub.s32 %s22, 1
        // Predicated region
        $region13: #{tpu_custom_call.1} parent=11 // pred_check
          %p215 = pneg %p111
        $region14: #{tpu_custom_call.1} parent=11 // pred_check_branch
          %217 = sbr.rel (%p215) target = $region16
        $region15: #{tpu_custom_call.1} parent=11 // pred_region
          %s219 = ssub.s32 256, 256
          %220 = vsyncadd [#allocation8], %s219
          %s221 = sshll.u32 [#allocation9], 4
          %s222 = int_to_ptr.vmem [resolvable:$true] %s221
          %227 = dma.hbm_to_vmem [thread:$0]  %s2, 256, %s222, [#allocation8], 64, 64, 4
        $region16: #{tpu_custom_call.1} parent=11 // pred_fallthru
          _
        // Predicated region
        $region17: #{tpu_custom_call.1} parent=11 // pred_check
          %p228 = pneg %p132
        $region18: #{tpu_custom_call.1} parent=11 // pred_check_branch
          %230 = sbr.rel (%p228) target = $region20
        $region19: #{tpu_custom_call.1} parent=11 // pred_region
          _
        $region20: #{tpu_custom_call.1} parent=11 // pred_fallthru
          _
        // Predicated region
        $region21: #{tpu_custom_call.1} parent=11 // pred_check
          %p231 = pneg %p153
        $region22: #{tpu_custom_call.1} parent=11 // pred_check_branch
          %233 = sbr.rel (%p231) target = $region24
        $region23: #{tpu_custom_call.1} parent=11 // pred_region
          %s235 = ssub.s32 1024, 1024
          %236 = vsyncadd [#allocation11], %s235
          %s237 = sshll.u32 [#allocation10], 4
          %s238 = int_to_ptr.vmem [resolvable:$true] %s237
          %243 = dma.hbm_to_vmem [thread:$0]  %s4, 1024, %s238, [#allocation11], 64, 64, 4
        $region24: #{tpu_custom_call.1} parent=11 // pred_fallthru
          _
        // Predicated region
        $region25: #{tpu_custom_call.1} parent=11 // pred_check
          %p244 = pneg %p174
        $region26: #{tpu_custom_call.1} parent=11 // pred_check_branch
          %246 = sbr.rel (%p244) target = $region28
        $region27: #{tpu_custom_call.1} parent=11 // pred_region
          _
        $region28: #{tpu_custom_call.1} parent=11 // pred_fallthru
          _
      $region12: #{tpu_custom_call.1} parent=5 // pred_fallthru
        _
      %p247 = scmp.lt.s32.totalorder %s22, 2
      // Predicated region
      $region29: #{tpu_custom_call.1} parent=5 // pred_check
        %p248 = pneg %p247
      $region30: #{tpu_custom_call.1} parent=5 // pred_check_branch
        %250 = sbr.rel (%p248) target = $region32
      $region31: #{tpu_custom_call.1} parent=5 // pred_region
        // Predicated region
        $region33: #{tpu_custom_call.1} parent=31 // pred_check
          %p251 = pneg %p56
        $region34: #{tpu_custom_call.1} parent=31 // pred_check_branch
          %253 = sbr.rel (%p251) target = $region36
        $region35: #{tpu_custom_call.1} parent=31 // pred_region
          %s254 = sand.u32 %s46, 1
          %s255 = scalar_lea.sflag [#allocation5], %s254
          %s256 = sand.u32 %s46, 1
          %s257 = smul.addr %s256, 4
          %s258 = scalar_lea.vmem [#allocation4], %s257
          %s260 = ssub.s32 64, 64
          %261 = vsyncadd %s255, %s260
          %s262 = sadd.s32 %s30, %s29
          %s263 = smul.addr %s262, 64
          %s264 = scalar_lea.hbm %s0, %s263
          %s266 = sshll.u32 %s258, 4
          %s267 = int_to_ptr.vmem [resolvable:$true] %s266
          %269 = dma.hbm_to_vmem [thread:$0]  %s264, 64, %s267, %s255
        $region36: #{tpu_custom_call.1} parent=31 // pred_fallthru
          _
        // Predicated region
        $region37: #{tpu_custom_call.1} parent=31 // pred_check
          %p270 = pneg %p84
        $region38: #{tpu_custom_call.1} parent=31 // pred_check_branch
          %272 = sbr.rel (%p270) target = $region40
        $region39: #{tpu_custom_call.1} parent=31 // pred_region
          %s273 = sand.u32 %s22, 1
          %s274 = scalar_lea.sflag [#allocation8], %s273
          %s275 = sand.u32 %s74, 1
          %s276 = scalar_lea.vmem [#allocation7], %s275
          %s278 = ssub.s32 16, 16
          %279 = vsyncadd %s274, %s278
          %s280 = sadd.s32 %s30, %s29
          %s281 = smul.addr %s280, 16
          %s282 = scalar_lea.hbm %s1, %s281
          %s284 = sshll.u32 %s276, 4
          %s285 = int_to_ptr.vmem [resolvable:$true] %s284
          %287 = dma.hbm_to_vmem [thread:$0]  %s282, 16, %s285, %s274
        $region40: #{tpu_custom_call.1} parent=31 // pred_fallthru
          _
      $region32: #{tpu_custom_call.1} parent=5 // pred_fallthru
        _
      %p288 = scmp.le.s32.totalorder 1, %s22
      %p289 = scmp.lt.s32.totalorder %s22, 3
      %p290 = pnand %p288, %p289
      %p291 = pneg %p290
      // Predicated region
      $region41: #{tpu_custom_call.1} parent=5 // pred_check
        _
      $region42: #{tpu_custom_call.1} parent=5 // pred_check_branch
        %293 = sbr.rel (%p290) target = $region44
      $region43: #{tpu_custom_call.1} parent=5 // pred_region
        %s294 = ssub.s32 %s22, 1
        %s295 = sand.u32 %s49, 1
        %s296 = scalar_lea.sflag [#allocation5], %s295
        %s297 = sand.u32 %s49, 1
        %s298 = smul.addr %s297, 4
        %s299 = scalar_lea.vmem [#allocation4], %s298
        // Predicated region
        $region45: #{tpu_custom_call.1} parent=43 // pred_check
          %p300 = pneg %p62
        $region46: #{tpu_custom_call.1} parent=43 // pred_check_branch
          %302 = sbr.rel (%p300) target = $region48
        $region47: #{tpu_custom_call.1} parent=43 // pred_region
          %303 = dma.done %s296, 64
        $region48: #{tpu_custom_call.1} parent=43 // pred_fallthru
          _
        %s304 = sand.u32 %s27, 1
        %s305 = scalar_lea.sflag [#allocation8], %s304
        %s306 = sand.u32 %s77, 1
        %s307 = scalar_lea.vmem [#allocation7], %s306
        // Predicated region
        $region49: #{tpu_custom_call.1} parent=43 // pred_check
          %p308 = pneg %p90
        $region50: #{tpu_custom_call.1} parent=43 // pred_check_branch
          %310 = sbr.rel (%p308) target = $region52
        $region51: #{tpu_custom_call.1} parent=43 // pred_region
          %311 = dma.done %s305, 16
        $region52: #{tpu_custom_call.1} parent=43 // pred_fallthru
          _
        // Predicated region
        $region53: #{tpu_custom_call.1} parent=43 // pred_check
          %p312 = pneg %p111
        $region54: #{tpu_custom_call.1} parent=43 // pred_check_branch
          %314 = sbr.rel (%p312) target = $region56
        $region55: #{tpu_custom_call.1} parent=43 // pred_region
          %315 = dma.done [#allocation8], 256
        $region56: #{tpu_custom_call.1} parent=43 // pred_fallthru
          _
        // Predicated region
        $region57: #{tpu_custom_call.1} parent=43 // pred_check
          %p316 = pneg %p153
        $region58: #{tpu_custom_call.1} parent=43 // pred_check_branch
          %318 = sbr.rel (%p316) target = $region60
        $region59: #{tpu_custom_call.1} parent=43 // pred_region
          %319 = dma.done [#allocation11], 1024
        $region60: #{tpu_custom_call.1} parent=43 // pred_fallthru
          _
        %s320 = sand.u32 %s49, 1
        %s321 = scalar_lea.sflag [#allocation5], %s320
        %s322 = sand.u32 %s49, 1
        %s323 = smul.addr %s322, 4
        %s324 = scalar_lea.vmem [#allocation4], %s323
        %p325 = pneg %p62
        %p326 = pneg %p59
        %s327 = sand.u32 %s27, 1
        %s328 = scalar_lea.sflag [#allocation8], %s327
        %s329 = sand.u32 %s77, 1
        %s330 = scalar_lea.vmem [#allocation7], %s329
        %p331 = pneg %p90
        %p332 = pneg %p87
        %p333 = pneg %p111
        %p334 = pneg %p108
        %p335 = pneg %p132
        %p336 = pneg %p129
        %p337 = pneg %p153
        %p338 = pneg %p150
        %p339 = pneg %p174
        %p340 = pneg %p171
        %p341 = pneg %p200
        %p342 = pneg %p197
        %s343 = sand.u32 %s187, 1
        %s344 = scalar_lea.sflag [#allocation6], %s343
        %s345 = sand.u32 %s187, 1
        %s346 = scalar_lea.vmem [#allocation12], %s345
        %p348 = scmp.eq.s32.totalorder %s32, 0
        // Predicated region
        $region61: #{tpu_custom_call.1} parent=43 // pred_check
          %p349 = pneg %p348
        $region62: #{tpu_custom_call.1} parent=43 // pred_check_branch
          %351 = sbr.rel (%p349) target = $region64
        $region63: #{tpu_custom_call.1} parent=43 // pred_region
          %vm352 = vcmask 253952
          %353 = vst.msk [vmem:[#allocation2] sm:$0x1] %vm352, 0.0
          %vm354 = vcmask 0
          %355 = vst.msk [vmem:[#allocation3] sm:$0x1] %vm354, 0.0
        $region64: #{tpu_custom_call.1} parent=43 // pred_fallthru
          _
        %v356 = vld [vmem:[%s299] sm:$0xf]
        %v357 = vld [vmem:[%s307] sm:$0x1]
        %v358 = vld [vmem:[#allocation2] sm:$0x1]
        %v359 = vpack.c.bf16 %v357, %v357
        %vm360 = vcmask 64512
        %v362 = vsel %vm360, %v359, 0
        %vm364 = vcmask 1043456
        %v366 = vsel %vm364, %v356, 0
        %368 = vmatprep.subr.bf16.mxu0 0
        %369 = vmatpush1.bf16.msra.mxu0 0
        %370 = vmatprep.subr.bf16.mxu0 0
        %371 = vmatpush1.bf16.msra.mxu0 0
        %372 = vmatprep.subr.bf16.mxu0 0
        %373 = vmatpush1.bf16.msra.mxu0 0
        %374 = vmatprep.subr.bf16.mxu0 0
        %375 = vmatpush1.bf16.msra.mxu0 0
        %376 = vmatprep.subr.bf16.mxu0 0
        %377 = vmatpush1.bf16.msra.mxu0 0
        %378 = vmatprep.subr.bf16.mxu0 0
        %379 = vmatpush1.bf16.msra.mxu0 0
        %380 = vmatprep.subr.bf16.mxu0 0
        %381 = vmatpush1.bf16.msra.mxu0 0
        %382 = vmatprep.subr.bf16.mxu0 0
        %383 = vmatpush1.bf16.msra.mxu0 %v366
        %384 = vmatprep.subr.bf16.mxu0 0
        %385 = vmatpush2.bf16.msra.mxu0 0
        %386 = vmatprep.subr.bf16.mxu0 0
        %387 = vmatpush2.bf16.msra.mxu0 0
        %388 = vmatprep.subr.bf16.mxu0 0
        %389 = vmatpush2.bf16.msra.mxu0 0
        %390 = vmatprep.subr.bf16.mxu0 0
        %391 = vmatpush2.bf16.msra.mxu0 0
        %392 = vmatprep.subr.bf16.mxu0 0
        %393 = vmatpush2.bf16.msra.mxu0 0
        %394 = vmatprep.subr.bf16.mxu0 0
        %395 = vmatpush2.bf16.msra.mxu0 0
        %396 = vmatprep.subr.bf16.mxu0 0
        %397 = vmatpush2.bf16.msra.mxu0 0
        %398 = vmatprep.subr.bf16.mxu0 0
        %399 = vmatpush2.bf16.msra.mxu0 0
        %400 = vmatprep.mubr.bf16.mxu0 0
        %401 = vmatmul.mubr.bf16.gmra.mxu0 %v362
        %v402 = vpop.f32.mrf.mxu0
        %v403 = vadd.f32 0.0, %v402
        %v404 = vpop.f32.mrf.mxu0
        %v405 = vpop.f32.mrf.mxu0
        %v406 = vpop.f32.mrf.mxu0
        %407 = vdwg.mxu0
        %v408 = vadd.f32 %v358, %v403
        %vm409 = vcmask 253952
        %410 = vst.msk [vmem:[#allocation2] sm:$0x1] %vm409, %v408
        %v411 = vld [vmem:[#allocation3] sm:$0x1]
        %vm412 = vcmask 57344
        %v413 = vsel %vm412, %v357, 0.0
        %414 = vadd.xlane.f32.xlu0 %v413
        %v415 = vpop.xlane.xlu0 %414
        %v416 = vadd.f32 %v411, %v415
        %vm417 = vcmask 0
        %418 = vst.msk [vmem:[#allocation3] sm:$0x1] %vm417, %v416
        // Predicated region
        $region65: #{tpu_custom_call.1} parent=43 // pred_check
          %p419 = pneg %p348
        $region66: #{tpu_custom_call.1} parent=43 // pred_check_branch
          %421 = sbr.rel (%p419) target = $region68
        $region67: #{tpu_custom_call.1} parent=43 // pred_region
          %v422 = vld [vmem:[#allocation3] sm:$0x1]
          %v423 = vmax.f32 %v422, 1e-09
          %v424 = vld [vmem:[#allocation2] sm:$0x1]
          %426 = vset.pattern.permute.xlu0 0
          %427 = vperm.xlu0 %426, %v423
          %v428 = vpop.permute.xlu0 %427
          %v430 = vlaneseq
          %v431 = vshrl.u32 %v430, 7
          %v432 = vsub.s32 0, %v431
          %v433 = vrot.slane %v428, %v432
          %v434 = vrcp.pop %v433
          %v435 = vmul.f32 %v424, %v434
          %v436 = vpack.c.bf16 %v435, %v435
          %v437 = vld [vmem:[#allocation9] sm:$0xf]
          %v438 = vld [vmem:[#allocation9 + $0x4] sm:$0xf]
          %v439 = vld [vmem:[#allocation9 + $0x8] sm:$0xf]
          %v440 = vld [vmem:[#allocation9 + $0xc] sm:$0xf]
          %v441 = vld [vmem:[%s3] sm:$0x1]
          %v446 = vunpack.c.l.b16 %v437
          %v447 = vunpack.c.l.b16 %v438
          %v448 = vunpack.c.l.b16 %v439
          %v449 = vunpack.c.l.b16 %v440
          %v450 = vpack.c.b16 %v447, %v446
          %v451 = vpack.c.b16 %v449, %v448
          %vm454 = vcmask 261120
          %v456 = vsel %vm454, %v436, 0
          %458 = vmatprep.subr.bf16.mxu0 0
          %459 = vmatpush1.bf16.msra.mxu0 0
          %460 = vmatprep.subr.bf16.mxu0 0
          %461 = vmatpush1.bf16.msra.mxu0 0
          %462 = vmatprep.subr.bf16.mxu0 0
          %463 = vmatpush1.bf16.msra.mxu0 0
          %464 = vmatprep.subr.bf16.mxu0 0
          %465 = vmatpush1.bf16.msra.mxu0 0
          %466 = vmatprep.subr.bf16.mxu0 0
          %467 = vmatpush1.bf16.msra.mxu0 0
          %468 = vmatprep.subr.bf16.mxu0 0
          %469 = vmatpush1.bf16.msra.mxu0 0
          %470 = vmatprep.subr.bf16.mxu0 0
          %471 = vmatpush1.bf16.msra.mxu0 %v451
          %472 = vmatprep.subr.bf16.mxu0 0
          %473 = vmatpush1.bf16.msra.mxu0 %v450
          %474 = vmatprep.subr.bf16.mxu0 0
          %475 = vmatpush2.bf16.msra.mxu0 0
          %476 = vmatprep.subr.bf16.mxu0 0
          %477 = vmatpush2.bf16.msra.mxu0 0
          %478 = vmatprep.subr.bf16.mxu0 0
          %479 = vmatpush2.bf16.msra.mxu0 0
          %480 = vmatprep.subr.bf16.mxu0 0
          %481 = vmatpush2.bf16.msra.mxu0 0
          %482 = vmatprep.subr.bf16.mxu0 0
          %483 = vmatpush2.bf16.msra.mxu0 0
          %484 = vmatprep.subr.bf16.mxu0 0
          %485 = vmatpush2.bf16.msra.mxu0 0
          %486 = vmatprep.subr.bf16.mxu0 0
          %487 = vmatpush2.bf16.msra.mxu0 0
          %488 = vmatprep.subr.bf16.mxu0 0
          %489 = vmatpush2.bf16.msra.mxu0 0
          %490 = vmatprep.mubr.bf16.mxu0 0
          %491 = vmatmul.mubr.bf16.gmra.mxu0 %v456
          %v492 = vpop.f32.mrf.mxu0
          %v493 = vadd.f32 %v441, %v492
          %v494 = vpop.f32.mrf.mxu0
          %v495 = vpop.f32.mrf.mxu0
          %v496 = vpop.f32.mrf.mxu0
          %497 = vdwg.mxu0
          %v498 = vmax.f32 %v493, 0.0
          %v499 = vpack.c.bf16 %v498, %v498
          %v500 = vld [vmem:[#allocation10] sm:$0xf]
          %v501 = vld [vmem:[#allocation10 + $0x4] sm:$0xf]
          %v502 = vld [vmem:[#allocation10 + $0x8] sm:$0xf]
          %v503 = vld [vmem:[#allocation10 + $0xc] sm:$0xf]
          %v504 = vld [vmem:[#allocation10 + $0x10] sm:$0xf]
          %v505 = vld [vmem:[#allocation10 + $0x14] sm:$0xf]
          %v506 = vld [vmem:[#allocation10 + $0x18] sm:$0xf]
          %v507 = vld [vmem:[#allocation10 + $0x1c] sm:$0xf]
          %v508 = vld [vmem:[#allocation10 + $0x20] sm:$0xf]
          %v509 = vld [vmem:[#allocation10 + $0x24] sm:$0xf]
          %v510 = vld [vmem:[#allocation10 + $0x28] sm:$0xf]
          %v511 = vld [vmem:[#allocation10 + $0x2c] sm:$0xf]
          %v512 = vld [vmem:[#allocation10 + $0x30] sm:$0xf]
          %v513 = vld [vmem:[#allocation10 + $0x34] sm:$0xf]
          %v514 = vld [vmem:[#allocation10 + $0x38] sm:$0xf]
          %v515 = vld [vmem:[#allocation10 + $0x3c] sm:$0xf]
          %v516 = vld [vmem:[%s5] sm:$0x1]
          %v533 = vunpack.c.l.b16 %v500
          %v534 = vunpack.c.l.b16 %v501
          %v535 = vunpack.c.l.b16 %v502
          %v536 = vunpack.c.l.b16 %v503
          %v537 = vunpack.c.l.b16 %v504
          %v538 = vunpack.c.l.b16 %v505
          %v539 = vunpack.c.l.b16 %v506
          %v540 = vunpack.c.l.b16 %v507
          %v541 = vunpack.c.l.b16 %v508
          %v542 = vunpack.c.l.b16 %v509
          %v543 = vunpack.c.l.b16 %v510
          %v544 = vunpack.c.l.b16 %v511
          %v545 = vunpack.c.l.b16 %v512
          %v546 = vunpack.c.l.b16 %v513
          %v547 = vunpack.c.l.b16 %v514
          %v548 = vunpack.c.l.b16 %v515
          %v549 = vpack.c.b16 %v534, %v533
          %v550 = vpack.c.b16 %v536, %v535
          %v551 = vpack.c.b16 %v538, %v537
          %v552 = vpack.c.b16 %v540, %v539
          %v553 = vpack.c.b16 %v542, %v541
          %v554 = vpack.c.b16 %v544, %v543
          %v555 = vpack.c.b16 %v546, %v545
          %v556 = vpack.c.b16 %v548, %v547
          %565 = vmatprep.subr.bf16.mxu0 0
          %566 = vmatpush1.bf16.msra.mxu0 %v556
          %567 = vmatprep.subr.bf16.mxu0 0
          %568 = vmatpush1.bf16.msra.mxu0 %v555
          %569 = vmatprep.subr.bf16.mxu0 0
          %570 = vmatpush1.bf16.msra.mxu0 %v554
          %571 = vmatprep.subr.bf16.mxu0 0
          %572 = vmatpush1.bf16.msra.mxu0 %v553
          %573 = vmatprep.subr.bf16.mxu0 0
          %574 = vmatpush1.bf16.msra.mxu0 %v552
          %575 = vmatprep.subr.bf16.mxu0 0
          %576 = vmatpush1.bf16.msra.mxu0 %v551
          %577 = vmatprep.subr.bf16.mxu0 0
          %578 = vmatpush1.bf16.msra.mxu0 %v550
          %579 = vmatprep.subr.bf16.mxu0 0
          %580 = vmatpush1.bf16.msra.mxu0 %v549
          %581 = vmatprep.subr.bf16.mxu0 0
          %582 = vmatpush2.bf16.msra.mxu0 0
          %583 = vmatprep.subr.bf16.mxu0 0
          %584 = vmatpush2.bf16.msra.mxu0 0
          %585 = vmatprep.subr.bf16.mxu0 0
          %586 = vmatpush2.bf16.msra.mxu0 0
          %587 = vmatprep.subr.bf16.mxu0 0
          %588 = vmatpush2.bf16.msra.mxu0 0
          %589 = vmatprep.subr.bf16.mxu0 0
          %590 = vmatpush2.bf16.msra.mxu0 0
          %591 = vmatprep.subr.bf16.mxu0 0
          %592 = vmatpush2.bf16.msra.mxu0 0
          %593 = vmatprep.subr.bf16.mxu0 0
          %594 = vmatpush2.bf16.msra.mxu0 0
          %595 = vmatprep.subr.bf16.mxu0 0
          %596 = vmatpush2.bf16.msra.mxu0 0
          %597 = vmatprep.mubr.bf16.mxu0 0
          %598 = vmatmul.mubr.bf16.gmra.mxu0 %v499
          %v599 = vpop.f32.mrf.mxu0
          %v600 = vadd.f32 %v516, %v599
          %v601 = vpop.f32.mrf.mxu0
          %v602 = vpop.f32.mrf.mxu0
          %v603 = vpop.f32.mrf.mxu0
          %604 = vdwg.mxu0
          %605 = vst [vmem:[%s346] sm:$0x1] %v600
        $region68: #{tpu_custom_call.1} parent=43 // pred_fallthru
          _
        %s606 = sand.u32 %s187, 1
        %s607 = scalar_lea.sflag [#allocation6], %s606
        %s608 = sand.u32 %s187, 1
        %s609 = scalar_lea.vmem [#allocation12], %s608
        // Predicated region
        $region69: #{tpu_custom_call.1} parent=43 // pred_check
          %p610 = pneg %p197
        $region70: #{tpu_custom_call.1} parent=43 // pred_check_branch
          %612 = sbr.rel (%p610) target = $region72
        $region71: #{tpu_custom_call.1} parent=43 // pred_region
          %s614 = ssub.s32 16, 16
          %615 = vsyncadd %s607, %s614
          %s616 = smul.addr %s31, 16
          %s617 = scalar_lea.hbm %s6, %s616
          %s619 = sshll.u32 %s609, 4
          %s620 = int_to_ptr.vmem [resolvable:$true] %s619
          %622 = dma.vmem_to_hbm [thread:$0]  %s620, 16, %s617, %s607
        $region72: #{tpu_custom_call.1} parent=43 // pred_fallthru
          _
      $region44: #{tpu_custom_call.1} parent=5 // pred_fallthru
        _
      %p623 = scmp.le.s32.totalorder 2, %s22
      // Predicated region
      $region73: #{tpu_custom_call.1} parent=5 // pred_check
        %p624 = pneg %p623
      $region74: #{tpu_custom_call.1} parent=5 // pred_check_branch
        %626 = sbr.rel (%p624) target = $region76
      $region75: #{tpu_custom_call.1} parent=5 // pred_region
        %s627 = ssub.s32 %s22, 2
        // Predicated region
        $region77: #{tpu_custom_call.1} parent=75 // pred_check
          %p628 = pneg %p203
        $region78: #{tpu_custom_call.1} parent=75 // pred_check_branch
          %630 = sbr.rel (%p628) target = $region80
        $region79: #{tpu_custom_call.1} parent=75 // pred_region
          %s631 = sand.u32 %s188, 1
          %s632 = scalar_lea.sflag [#allocation6], %s631
          %s633 = sand.u32 %s188, 1
          %s634 = scalar_lea.vmem [#allocation12], %s633
          %635 = dma.done %s632, 16
        $region80: #{tpu_custom_call.1} parent=75 // pred_fallthru
          _
      $region76: #{tpu_custom_call.1} parent=5 // pred_fallthru
        _
    $region6: #{tpu_custom_call.1} parent=1 // loop_footer
      %s26 = sadd.s32 1, %s22
    $region7: #{tpu_custom_call.1} parent=1 // loop_footer_branch
      %21 = sbr.rel target = $region3
    $region8: #{tpu_custom_call.1} parent=1 // loop_exit
      _
    %636 = vsyncpa [#allocation5], 1
    %s637 = scalar_lea.sflag [#allocation5], 1
    %638 = vsyncpa %s637, 1
    %639 = vsyncpa [#allocation8], 1
    %s640 = scalar_lea.sflag [#allocation8], 1
    %641 = vsyncpa %s640, 1
    %642 = vsyncpa [#allocation11], 1
    %643 = vsyncpa [#allocation6], 1
    %s644 = scalar_lea.sflag [#allocation6], 1
    %645 = vsyncpa %s644, 1

</llo_original>
